<compile_context>
chip_gen: v7x
topology: tpu7x:2x2x1
jax: 0.10.0
libtpu: 0.0.40
codegen_flags: <defaults>
</compile_context>

<pallas_src>
import math
import functools

import jax
import jax.numpy as jnp
import numpy as np
from jax.experimental import pallas as pl
from jax.experimental.pallas import tpu as pltpu


NEG_LARGE = -1e30  # finite mask fill: keeps online-softmax max update well-defined


def _pick_tile(dim, target, align):
    """Largest `align`-multiple divisor of `dim` that is <= target, else the full dim."""
    if dim <= target:
        return dim
    t = target - (target % align)
    while t >= align:
        if dim % t == 0:
            return t
        t -= align
    return dim


def _as_bf16(w):
    return w if w.dtype == jnp.bfloat16 else w.astype(jnp.bfloat16)


def _attn_vmem_bytes(TQ, TKV, F, mrows_tile, in_bytes, out_bytes, n_head):
    """Rough per-step VMEM footprint of the attention kernel (double-buffered blocks)."""
    db = 2
    q_in = db * TQ * F * in_bytes
    kv_in = db * 2 * TKV * F * 2                       # bf16 K + V tiles
    mask_in = db * mrows_tile * TKV * 1                # int8 mask
    weights = db * 2 * (F * F * 2 + F * 4)             # wq/wo bf16 + bq/bo f32
    out = db * TQ * F * out_bytes
    scratch = TQ * F * (2 + 4) + 2 * TQ * 128 * 4      # qp bf16 + acc f32 + m/l (lane-padded)
    return q_in + kv_in + mask_in + weights + out + scratch


# ---------------------------------------------------------------------------
# Kernel 1a: fused K|V projection (key is value), single (F, 2F) matmul.
# ---------------------------------------------------------------------------
def _kv_proj_fused_kernel(x_in, wkv, bkv, kp_ref, vp_ref):
    F = kp_ref.shape[-1]
    x = x_in[0].astype(jnp.bfloat16)                                   # (TKV, F)
    kv = jnp.dot(x, wkv[...], preferred_element_type=jnp.float32) + bkv[...]
    kp_ref[0] = kv[:, :F].astype(kp_ref.dtype)                         # lane-dense bf16 store
    vp_ref[0] = kv[:, F:].astype(vp_ref.dtype)


# ---------------------------------------------------------------------------
# Kernel 1b: separate K / V projections (general key != value signature).
# ---------------------------------------------------------------------------
def _kv_proj_kernel(k_in, v_in, wk, bk, wv, bv, kp_ref, vp_ref):
    xk = k_in[0].astype(jnp.bfloat16)                                  # (TKV, F)
    xv = v_in[0].astype(jnp.bfloat16)                                  # (TKV, F)
    kp = jnp.dot(xk, wk[...], preferred_element_type=jnp.float32) + bk[...]
    vp = jnp.dot(xv, wv[...], preferred_element_type=jnp.float32) + bv[...]
    kp_ref[0] = kp.astype(kp_ref.dtype)
    vp_ref[0] = vp.astype(vp_ref.dtype)


# ---------------------------------------------------------------------------
# Kernel 2: flash-style (online softmax) cross attention over KV tiles.
# ---------------------------------------------------------------------------
def _flash_attn_kernel(q_in, k_in, v_in, mask_in, wq, bq, wo, bo,
                       out_ref,
                       qp_ref, m_ref, l_ref, acc_ref,
                       *, n_head, d_k, scale):
    j = pl.program_id(2)
    TQ = acc_ref.shape[0]

    # ---- init at the first KV tile of this (batch, q-tile) ------------------
    @pl.when(j == 0)
    def _():
        xq = q_in[0].astype(jnp.bfloat16)                              # (TQ, F)
        qp = jnp.dot(xq, wq[...], preferred_element_type=jnp.float32) + bq[...]
        qp_ref[...] = (qp * scale).astype(jnp.bfloat16)                # fold 1/sqrt(d_k)
        m_ref[...] = jnp.full(m_ref.shape, NEG_LARGE, jnp.float32)
        l_ref[...] = jnp.zeros_like(l_ref)
        acc_ref[...] = jnp.zeros_like(acc_ref)

    # ---- mask for this KV tile, shared by all heads --------------------------
    keep_bool = mask_in[0] != 0                         # (mrows, TKV)
    bias = jnp.where(keep_bool, 0.0, NEG_LARGE)         # f32: 0 keep / -1e30 masked
    keep_bf = keep_bool.astype(jnp.bfloat16)            # exact zeros on masked keys

    m_prev_all = m_ref[...]                             # (TQ, n_head)
    l_prev_all = l_ref[...]                             # (TQ, n_head)

    # ---- static unrolled loop over heads (lane slices, no (T,H,d_k) reshape) -
    # TODO(synk): for n_head >= 8 check bundle dump for vreg spills; if spilling,
    # bound live ranges with lax.fori_loop over heads (pl.ds + pl.multiple_of).
    m_news, alphas, l_adds, pvs = [], [], [], []
    for h in range(n_head):
        lo = h * d_k
        q_h = qp_ref[:, lo:lo + d_k]                    # (TQ, d_k)  bf16
        k_h = k_in[0, :, lo:lo + d_k]                   # (TKV, d_k) bf16
        v_h = v_in[0, :, lo:lo + d_k]                   # (TKV, d_k) bf16

        # scores: (TQ, TKV) with the long KV axis on the lanes
        s = jax.lax.dot_general(q_h, k_h, (((1,), (1,)), ((), ())),
                                preferred_element_type=jnp.float32)
        s = s + bias

        m_prev = m_prev_all[:, h:h + 1]                 # (TQ, 1)
        m_new = jnp.maximum(m_prev, s.max(axis=-1, keepdims=True))
        alpha = jnp.exp(m_prev - m_new)                 # (TQ, 1) f32, tiny EUP cost
        # big exp runs on the EUP bf16 path; p is bf16 and ready for the MXU
        p = jnp.exp((s - m_new).astype(jnp.bfloat16)) * keep_bf         # (TQ, TKV)
        l_add = jnp.sum(p, axis=-1, dtype=jnp.float32, keepdims=True)   # f32 accumulate
        pv = jnp.dot(p, v_h, preferred_element_type=jnp.float32)        # (TQ, d_k)

        m_news.append(m_new); alphas.append(alpha)
        l_adds.append(l_add); pvs.append(pv)

    # ---- batched (lane-dense) state update across all heads ------------------
    alpha_cols = jnp.concatenate(alphas, axis=-1)                        # (TQ, n_head)
    m_ref[...] = jnp.concatenate(m_news, axis=-1)
    l_ref[...] = alpha_cols * l_prev_all + jnp.concatenate(l_adds, axis=-1)
    alpha_full = jnp.concatenate(
        [jnp.broadcast_to(alphas[h], (TQ, d_k)) for h in range(n_head)], axis=-1)
    pv_all = jnp.concatenate(pvs, axis=-1)                               # (TQ, F)
    acc_ref[...] = alpha_full * acc_ref[...] + pv_all                    # one F-wide FMA+store

    # ---- finalize: normalize + output projection ------------------------------
    @pl.when(j == pl.num_programs(2) - 1)
    def _():
        l_all = l_ref[...]                                               # (TQ, n_head)
        inv = jnp.where(l_all > 0.0, pl.reciprocal(l_all, approx=True), 0.0)
        inv_full = jnp.concatenate(
            [jnp.broadcast_to(inv[:, h:h + 1], (TQ, d_k)) for h in range(n_head)],
            axis=-1)                                                     # (TQ, F)
        ctx = acc_ref[...] * inv_full
        out = jnp.dot(ctx.astype(jnp.bfloat16), wo[...],
                      preferred_element_type=jnp.float32) + bo[...]
        out_ref[0] = out.astype(out_ref.dtype)


# ---------------------------------------------------------------------------
# Wrapper
# ---------------------------------------------------------------------------
def multi_headed_cross_attention(query, key, value, mask, params, *, n_head,
                                 q_tile=512, kv_tile=1024):
    """Pallas implementation of MultiHeadedCrossAttention.forward (eval mode).

    Returns (output, (k_cache, v_cache)) like the PyTorch module.
    """
    # TODO(synk): dropout on the attention weights is identity here (eval mode).
    # TODO(synk): pre-existing KV cache, GQA/MQA (n_kv_head), beam reshape and the
    #             empty-mask ("no mask") branches of the torch forward are not implemented.
    B, T1, F = query.shape
    _, T2, _ = key.shape
    assert F % n_head == 0
    d_k = F // n_head
    scale = 1.0 / math.sqrt(d_k)

    wq, bq, wk, bk, wv, bv, wo, bo = params
    # bf16 weights feed the MXU at full rate and halve weight DMA/VMEM bytes; the
    # cast is skipped when the caller already passes (cached) bf16 weights.
    # TODO(synk): repeated callers should pre-cast weights once instead of per call.
    wq_b, wk_b, wv_b, wo_b = (_as_bf16(w) for w in (wq, wk, wv, wo))
    bq2, bk2, bv2, bo2 = (b.reshape(1, F).astype(jnp.float32)
                          for b in (bq, bk, bv, bo))

    mask_i8 = mask.astype(jnp.int8)           # 1 B/elem mask stream
    mrows = mask_i8.shape[1]                  # 1 (padding mask) or T1 (full mask)
    assert mrows in (1, T1), "mask must be (B, 1, T2) or (B, T1, T2)"

    TQ = _pick_tile(T1, q_tile, 8)            # sublane-aligned q tile
    # v7x has 2 TensorCores: make sure there are >= 2 "parallel" programs when possible.
    if B * (T1 // TQ) < 2:
        tq2 = _pick_tile(T1, max(8, (T1 // 2) // 8 * 8), 8)
        if T1 // tq2 >= 2:
            TQ = tq2
    TKV = _pick_tile(T2, kv_tile, 128)        # lane-aligned KV tile (mask last dim)
    n_i = T1 // TQ
    n_j = T2 // TKV

    # v7x-safe scoped-VMEM budget (64 MiB physical there).
    vmem_limit = 48 * 1024 * 1024
    est = _attn_vmem_bytes(TQ, TKV, F, TQ if mrows > 1 else 1,
                           query.dtype.itemsize, query.dtype.itemsize, n_head)
    if est > vmem_limit:
        raise ValueError(
            f"attention tile (TQ={TQ}, TKV={TKV}, F={F}) needs ~{est >> 20} MiB VMEM "
            f"> {vmem_limit >> 20} MiB budget; pad T1/T2 to tile-friendly lengths or "
            f"pass smaller q_tile/kv_tile")

    # ---- kernel 1: K/V projection; lane-dense bf16 (B, T2, F) doubles as the cache ----
    # TODO(synk): on v7x consider pipeline_mode=pl.Buffered(1) on the constant
    #             weight/bias BlockSpecs to avoid double-buffering resident weights.
    kv_out_shape = (jax.ShapeDtypeStruct((B, T2, F), jnp.bfloat16),
                    jax.ShapeDtypeStruct((B, T2, F), jnp.bfloat16))
    kv_out_specs = (pl.BlockSpec((1, TKV, F), lambda b, j: (b, j, 0)),
                    pl.BlockSpec((1, TKV, F), lambda b, j: (b, j, 0)))
    kv_cparams = pltpu.CompilerParams(
        dimension_semantics=("parallel", "parallel"),
        vmem_limit_bytes=vmem_limit)

    if key is value:
        # wenet cross-attn case: fetch the input tile once, fused (F, 2F) matmul.
        wkv_b = jnp.concatenate([wk_b, wv_b], axis=1)
        bkv2 = jnp.concatenate([bk2, bv2], axis=1)
        kproj, vproj = pl.pallas_call(
            _kv_proj_fused_kernel,
            out_shape=kv_out_shape,
            grid_spec=pltpu.PrefetchScalarGridSpec(
                num_scalar_prefetch=0,
                grid=(B, n_j),
                in_specs=[
                    pl.BlockSpec((1, TKV, F), lambda b, j: (b, j, 0)),   # key (== value)
                    pl.BlockSpec((F, 2 * F), lambda b, j: (0, 0)),       # [wk | wv] bf16
                    pl.BlockSpec((1, 2 * F), lambda b, j: (0, 0)),       # [bk | bv]
                ],
                out_specs=kv_out_specs),
            compiler_params=kv_cparams,
        )(key, wkv_b, bkv2)
    else:
        kproj, vproj = pl.pallas_call(
            _kv_proj_kernel,
            out_shape=kv_out_shape,
            grid_spec=pltpu.PrefetchScalarGridSpec(
                num_scalar_prefetch=0,
                grid=(B, n_j),
                in_specs=[
                    pl.BlockSpec((1, TKV, F), lambda b, j: (b, j, 0)),   # key
                    pl.BlockSpec((1, TKV, F), lambda b, j: (b, j, 0)),   # value
                    pl.BlockSpec((F, F), lambda b, j: (0, 0)),           # wk (bf16)
                    pl.BlockSpec((1, F), lambda b, j: (0, 0)),           # bk
                    pl.BlockSpec((F, F), lambda b, j: (0, 0)),           # wv (bf16)
                    pl.BlockSpec((1, F), lambda b, j: (0, 0)),           # bv
                ],
                out_specs=kv_out_specs),
            compiler_params=kv_cparams,
        )(key, value, wk_b, bk2, wv_b, bv2)

    # ---- kernel 2: flash attention over KV tiles ---------------------------------
    if mrows == 1:
        mask_spec = pl.BlockSpec((1, 1, TKV), lambda b, i, j: (b, 0, j))
    else:
        mask_spec = pl.BlockSpec((1, TQ, TKV), lambda b, i, j: (b, i, j))

    kernel = functools.partial(_flash_attn_kernel,
                               n_head=n_head, d_k=d_k, scale=scale)

    out = pl.pallas_call(
        kernel,
        out_shape=jax.ShapeDtypeStruct((B, T1, F), query.dtype),
        grid_spec=pltpu.PrefetchScalarGridSpec(
            num_scalar_prefetch=0,
            grid=(B, n_i, n_j),
            in_specs=[
                pl.BlockSpec((1, TQ, F), lambda b, i, j: (b, i, 0)),   # query
                pl.BlockSpec((1, TKV, F), lambda b, i, j: (b, j, 0)),  # projected K (bf16)
                pl.BlockSpec((1, TKV, F), lambda b, i, j: (b, j, 0)),  # projected V (bf16)
                mask_spec,                                             # mask tile (int8)
                pl.BlockSpec((F, F), lambda b, i, j: (0, 0)),          # wq (bf16)
                pl.BlockSpec((1, F), lambda b, i, j: (0, 0)),          # bq
                pl.BlockSpec((F, F), lambda b, i, j: (0, 0)),          # wo (bf16)
                pl.BlockSpec((1, F), lambda b, i, j: (0, 0)),          # bo
            ],
            out_specs=pl.BlockSpec((1, TQ, F), lambda b, i, j: (b, i, 0)),
            scratch_shapes=[
                pltpu.VMEM((TQ, F), jnp.bfloat16),        # projected & scaled q
                pltpu.VMEM((TQ, n_head), jnp.float32),    # running max m (per head)
                pltpu.VMEM((TQ, n_head), jnp.float32),    # running sum l (per head)
                pltpu.VMEM((TQ, F), jnp.float32),         # output accumulator
            ]),
        compiler_params=pltpu.CompilerParams(
            dimension_semantics=("parallel", "parallel", "arbitrary"),
            vmem_limit_bytes=vmem_limit),
    )(query, kproj, vproj, mask_i8, wq_b, bq2, wo_b, bo2)

    # Cache in torch's head-first layout (B, H, T2, d_k); reshape/transpose happens
    # outside the kernel so in-kernel stores stay F-wide / unmasked.
    # TODO(synk): cache values pass through bf16 storage (slight precision downgrade
    #             vs a pure-f32 projection).
    k_cache = kproj.reshape(B, T2, n_head, d_k).transpose(0, 2, 1, 3).astype(query.dtype)
    v_cache = vproj.reshape(B, T2, n_head, d_k).transpose(0, 2, 1, 3).astype(query.dtype)
    return out, (k_cache, v_cache)


# ---------------------------------------------------------------------------
# Pure-JAX reference mirroring the PyTorch forward (f32 math).
# ---------------------------------------------------------------------------
def reference(query, key, value, mask, params, *, n_head):
    B, T1, F = query.shape
    _, T2, _ = key.shape
    d_k = F // n_head
    wq, bq, wk, bk, wv, bv, wo, bo = params

    q = (query @ wq + bq).reshape(B, T1, n_head, d_k).transpose(0, 2, 1, 3)
    k = (key @ wk + bk).reshape(B, T2, n_head, d_k).transpose(0, 2, 1, 3)
    v = (value @ wv + bv).reshape(B, T2, n_head, d_k).transpose(0, 2, 1, 3)

    scores = jnp.einsum('bhtd,bhsd->bhts', q, k) / math.sqrt(d_k)
    m = (mask[:, None, :, :] == 0)              # (B, 1, 1|T1, T2)
    scores = jnp.where(m, -jnp.inf, scores)
    attn = jax.nn.softmax(scores.astype(jnp.float32), axis=-1)
    attn = jnp.where(m, 0.0, attn).astype(value.dtype)
    ctx = jnp.einsum('bhts,bhsd->bhtd', attn, v)
    ctx = ctx.transpose(0, 2, 1, 3).reshape(B, T1, n_head * d_k)
    out = ctx @ wo + bo
    return out, (k, v)


if __name__ == "__main__":
    B, T1, T2 = 2, 8, 16
    n_head, n_feat = 4, 32

    root = jax.random.PRNGKey(0)
    keys = jax.random.split(root, 16)

    query = jax.random.normal(keys[0], (B, T1, n_feat), dtype=jnp.float32)
    key_x = jax.random.normal(keys[1], (B, T2, n_feat), dtype=jnp.float32)
    value = jax.random.normal(keys[2], (B, T2, n_feat), dtype=jnp.float32)

    # Padding mask (B, 1, T2): keep the first part of each sequence.
    lens = jnp.array([T2, T2 - 5], dtype=jnp.int32)
    mask = (jnp.arange(T2)[None, None, :] < lens[:, None, None])   # bool

    # Deterministic parameters, stored as (in, out) so y = x @ W + b.
    scale_w = 1.0 / math.sqrt(n_feat)

    def _u(k, shape):
        return jax.random.uniform(k, shape, jnp.float32, -scale_w, scale_w)

    wq, bq = _u(keys[3], (n_feat, n_feat)), _u(keys[4], (n_feat,))
    wk, bk = _u(keys[5], (n_feat, n_feat)), _u(keys[6], (n_feat,))
    wv, bv = _u(keys[7], (n_feat, n_feat)), _u(keys[8], (n_feat,))
    wo, bo = _u(keys[9], (n_feat, n_feat)), _u(keys[10], (n_feat,))
    params = (wq, bq, wk, bk, wv, bv, wo, bo)

    # ---- Test 1: key != value (separate-projection path), padding mask ----------
    out, (k_cache, v_cache) = multi_headed_cross_attention(
        query, key_x, value, mask, params, n_head=n_head)
    out = jax.block_until_ready(out)
    k_cache = jax.block_until_ready(k_cache)
    v_cache = jax.block_until_ready(v_cache)

    out_ref, (k_ref, v_ref) = reference(
        query, key_x, value, mask, params, n_head=n_head)

    # Kernel computes matmuls/exp in bf16 (f32 accumulation); compare against the
    # f32 reference with a bf16-appropriate tolerance.
    np.testing.assert_allclose(np.asarray(out), np.asarray(out_ref),
                               rtol=5e-2, atol=5e-2)
    np.testing.assert_allclose(np.asarray(k_cache), np.asarray(k_ref),
                               rtol=5e-2, atol=5e-2)
    np.testing.assert_allclose(np.asarray(v_cache), np.asarray(v_ref),
                               rtol=5e-2, atol=5e-2)

    # ---- Test 2: key IS value (fused K|V projection) + general (B, T1, T2) mask --
    bern = jax.random.bernoulli(keys[11], 0.6, (B, T1, T2))
    mask_full = bern.at[:, :, 0].set(True)        # keep >= 1 key per query row
    out2, (k2, v2) = multi_headed_cross_attention(
        query, key_x, key_x, mask_full, params, n_head=n_head)
    out2 = jax.block_until_ready(out2)
    out2_ref, (k2_ref, v2_ref) = reference(
        query, key_x, key_x, mask_full, params, n_head=n_head)
    np.testing.assert_allclose(np.asarray(out2), np.asarray(out2_ref),
                               rtol=5e-2, atol=5e-2)
    np.testing.assert_allclose(np.asarray(k2), np.asarray(k2_ref),
                               rtol=5e-2, atol=5e-2)
    np.testing.assert_allclose(np.asarray(v2), np.asarray(v2_ref),
                               rtol=5e-2, atol=5e-2)

    print("KERNEL_OK")
</pallas_src>

<mosaic_0001>
module attributes {stable_mosaic.version = 11 : i64} {
  func.func @_kv_proj_kernel(%arg0: i32, %arg1: i32, %arg2: memref<1x16x32xf32, #tpu.memory_space<vmem>>, %arg3: memref<1x16x32xf32, #tpu.memory_space<vmem>>, %arg4: memref<32x32xbf16, #tpu.memory_space<vmem>>, %arg5: memref<1x32xf32, #tpu.memory_space<vmem>>, %arg6: memref<32x32xbf16, #tpu.memory_space<vmem>>, %arg7: memref<1x32xf32, #tpu.memory_space<vmem>>, %arg8: memref<1x16x32xbf16, #tpu.memory_space<vmem>>, %arg9: memref<1x16x32xbf16, #tpu.memory_space<vmem>>) attributes {dimension_semantics = [#tpu.dimension_semantics<parallel>, #tpu.dimension_semantics<parallel>], iteration_bounds = array<i64: 2, 1>, scalar_prefetch = 0 : i64, scratch_operands = 0 : i64, tpu.core_type = #tpu.core_type<tc>, window_params = [{transform_indices = @transform_0, window_bounds = array<i64: 1, 16, 32>}, {transform_indices = @transform_1, window_bounds = array<i64: 1, 16, 32>}, {pipeline_mode = #tpu.pipeline_mode<synchronous>, transform_indices = @transform_2, window_bounds = array<i64: 32, 32>}, {pipeline_mode = #tpu.pipeline_mode<synchronous>, transform_indices = @transform_3, window_bounds = array<i64: 1, 32>}, {pipeline_mode = #tpu.pipeline_mode<synchronous>, transform_indices = @transform_4, window_bounds = array<i64: 32, 32>}, {pipeline_mode = #tpu.pipeline_mode<synchronous>, transform_indices = @transform_5, window_bounds = array<i64: 1, 32>}, {transform_indices = @transform_6, window_bounds = array<i64: 1, 16, 32>}, {transform_indices = @transform_7, window_bounds = array<i64: 1, 16, 32>}]} {
    %c0 = arith.constant 0 : index
    %c0_0 = arith.constant 0 : index
    %c0_1 = arith.constant 0 : index
    %0 = vector.load %arg2[%c0, %c0_0, %c0_1] : memref<1x16x32xf32, #tpu.memory_space<vmem>>, vector<1x16x32xf32>
    %1 = vector.shape_cast %0 : vector<1x16x32xf32> to vector<16x32xf32>
    %2 = arith.truncf %1 : vector<16x32xf32> to vector<16x32xbf16>
    %c0_2 = arith.constant 0 : index
    %c0_3 = arith.constant 0 : index
    %c0_4 = arith.constant 0 : index
    %3 = vector.load %arg3[%c0_2, %c0_3, %c0_4] : memref<1x16x32xf32, #tpu.memory_space<vmem>>, vector<1x16x32xf32>
    %4 = vector.shape_cast %3 : vector<1x16x32xf32> to vector<16x32xf32>
    %5 = arith.truncf %4 : vector<16x32xf32> to vector<16x32xbf16>
    %c0_5 = arith.constant 0 : index
    %c0_6 = arith.constant 0 : index
    %6 = vector.load %arg4[%c0_5, %c0_6] : memref<32x32xbf16, #tpu.memory_space<vmem>>, vector<32x32xbf16>
    %cst = arith.constant dense<0.000000e+00> : vector<16x32xf32>
    %7 = tpu.matmul %2, %6, %cst {dimension_numbers = #tpu.dot_dimension_numbers<[1], [0], [0], [1], [0, 0, 1, 1], [], []>} : vector<16x32xbf16>, vector<32x32xbf16>, vector<16x32xf32> -> vector<16x32xf32>
    %c0_7 = arith.constant 0 : index
    %c0_8 = arith.constant 0 : index
    %8 = vector.load %arg5[%c0_7, %c0_8] : memref<1x32xf32, #tpu.memory_space<vmem>>, vector<1x32xf32>
    %9 = vector.broadcast %8 : vector<1x32xf32> to vector<16x32xf32>
    %10 = arith.addf %7, %9 : vector<16x32xf32>
    %c0_9 = arith.constant 0 : index
    %c0_10 = arith.constant 0 : index
    %11 = vector.load %arg6[%c0_9, %c0_10] : memref<32x32xbf16, #tpu.memory_space<vmem>>, vector<32x32xbf16>
    %cst_11 = arith.constant dense<0.000000e+00> : vector<16x32xf32>
    %12 = tpu.matmul %5, %11, %cst_11 {dimension_numbers = #tpu.dot_dimension_numbers<[1], [0], [0], [1], [0, 0, 1, 1], [], []>} : vector<16x32xbf16>, vector<32x32xbf16>, vector<16x32xf32> -> vector<16x32xf32>
    %c0_12 = arith.constant 0 : index
    %c0_13 = arith.constant 0 : index
    %13 = vector.load %arg7[%c0_12, %c0_13] : memref<1x32xf32, #tpu.memory_space<vmem>>, vector<1x32xf32>
    %14 = vector.broadcast %13 : vector<1x32xf32> to vector<16x32xf32>
    %15 = arith.addf %12, %14 : vector<16x32xf32>
    %16 = arith.truncf %10 : vector<16x32xf32> to vector<16x32xbf16>
    %c0_14 = arith.constant 0 : index
    %c0_15 = arith.constant 0 : index
    %c0_16 = arith.constant 0 : index
    %17 = vector.load %arg8[%c0_14, %c0_15, %c0_16] : memref<1x16x32xbf16, #tpu.memory_space<vmem>>, vector<1x16x32xbf16>
    %18 = vector.shape_cast %17 : vector<1x16x32xbf16> to vector<16x32xbf16>
    %19 = vector.shape_cast %16 : vector<16x32xbf16> to vector<1x16x32xbf16>
    tpu.vector_store %arg8[%c0_14, %c0_15, %c0_16], %19 {strides = array<i32>} : memref<1x16x32xbf16, #tpu.memory_space<vmem>>, vector<1x16x32xbf16>,
    %20 = arith.truncf %15 : vector<16x32xf32> to vector<16x32xbf16>
    %c0_17 = arith.constant 0 : index
    %c0_18 = arith.constant 0 : index
    %c0_19 = arith.constant 0 : index
    %21 = vector.load %arg9[%c0_17, %c0_18, %c0_19] : memref<1x16x32xbf16, #tpu.memory_space<vmem>>, vector<1x16x32xbf16>
    %22 = vector.shape_cast %21 : vector<1x16x32xbf16> to vector<16x32xbf16>
    %23 = vector.shape_cast %20 : vector<16x32xbf16> to vector<1x16x32xbf16>
    tpu.vector_store %arg9[%c0_17, %c0_18, %c0_19], %23 {strides = array<i32>} : memref<1x16x32xbf16, #tpu.memory_space<vmem>>, vector<1x16x32xbf16>,
    return
  }
  func.func @transform_0(%arg0: i32, %arg1: i32) -> (i32, i32, i32) {
    %c0_i32 = arith.constant 0 : i32
    %c0_i32_0 = arith.constant 0 : i32
    return %arg0, %arg1, %c0_i32 : i32, i32, i32
  }
  func.func @transform_1(%arg0: i32, %arg1: i32) -> (i32, i32, i32) {
    %c0_i32 = arith.constant 0 : i32
    %c0_i32_0 = arith.constant 0 : i32
    return %arg0, %arg1, %c0_i32 : i32, i32, i32
  }
  func.func @transform_2(%arg0: i32, %arg1: i32) -> (i32, i32) {
    %c0_i32 = arith.constant 0 : i32
    %c0_i32_0 = arith.constant 0 : i32
    %c0_i32_1 = arith.constant 0 : i32
    return %c0_i32, %c0_i32_0 : i32, i32
  }
  func.func @transform_3(%arg0: i32, %arg1: i32) -> (i32, i32) {
    %c0_i32 = arith.constant 0 : i32
    %c0_i32_0 = arith.constant 0 : i32
    %c0_i32_1 = arith.constant 0 : i32
    return %c0_i32, %c0_i32_0 : i32, i32
  }
  func.func @transform_4(%arg0: i32, %arg1: i32) -> (i32, i32) {
    %c0_i32 = arith.constant 0 : i32
    %c0_i32_0 = arith.constant 0 : i32
    %c0_i32_1 = arith.constant 0 : i32
    return %c0_i32, %c0_i32_0 : i32, i32
  }
  func.func @transform_5(%arg0: i32, %arg1: i32) -> (i32, i32) {
    %c0_i32 = arith.constant 0 : i32
    %c0_i32_0 = arith.constant 0 : i32
    %c0_i32_1 = arith.constant 0 : i32
    return %c0_i32, %c0_i32_0 : i32, i32
  }
  func.func @transform_6(%arg0: i32, %arg1: i32) -> (i32, i32, i32) {
    %c0_i32 = arith.constant 0 : i32
    %c0_i32_0 = arith.constant 0 : i32
    return %arg0, %arg1, %c0_i32 : i32, i32, i32
  }
  func.func @transform_7(%arg0: i32, %arg1: i32) -> (i32, i32, i32) {
    %c0_i32 = arith.constant 0 : i32
    %c0_i32_0 = arith.constant 0 : i32
    return %arg0, %arg1, %c0_i32 : i32, i32, i32
  }
}

</mosaic_0001>

<llo_original>
// kernel: tpu_custom_call.1
$region0: #{tpu_custom_call.1}
  #allocation0 [shape = 'u32[]', space=smem, size = 0x4, offset = 0x4, fixed_abs, tag = 'smem constant byte address 0x4 - core index']
  #allocation1 [shape = 'u32[144,128]{1,0:T(1,128)}', space=vmem, size = 0x12000, scoped, tag = 'internal scratch']
  %s0 = inlined_call_operand.hbm [shape: f32[2,16,32], index: 0, kind: input, shape index: {}]
  %s1 = inlined_call_operand.hbm [shape: f32[2,16,32], index: 1, kind: input, shape index: {}]
  %s2 = inlined_call_operand.hbm [shape: bf16[32,32], index: 2, kind: input, shape index: {}]
  %s3 = inlined_call_operand.vmem [shape: f32[1,32], index: 3, kind: input, shape index: {}]
  %s4 = inlined_call_operand.hbm [shape: bf16[32,32], index: 4, kind: input, shape index: {}]
  %s5 = inlined_call_operand.vmem [shape: f32[1,32], index: 5, kind: input, shape index: {}]
  %s6 = inlined_call_operand.hbm [shape: bf16[2,16,32], index: 6, kind: output, shape index: {0}]
  %s7 = inlined_call_operand.hbm [shape: bf16[2,16,32], index: 7, kind: output, shape index: {1}]
  %8 = xla_tuple %s6, %s7
  %s9 = sld [smem:[#allocation0]]
  $region81: #{tpu_custom_call.1} parent=0
    _
  %s11 = ssub.s32 1, %s9
  %s12 = scalar_select 0, %s11, %s9
  $region1: #{tpu_custom_call.1} parent=0
    #allocation2 [shape = 'u8[16384]{0}', space=vmem, size = 0x4000, scoped, tag = 'input window, operand 0']
    #allocation3 [shape = 's32[2]{0}', space=sflag, size = 0x8, scoped, tag = 'scoped memory for tpu_custom_call.1']
    #allocation4 [shape = 's32[2]{0}', space=sflag, size = 0x8, scoped, tag = 'scoped memory for tpu_custom_call.1']
    #allocation5 [shape = 'u8[16384]{0}', space=vmem, size = 0x4000, scoped, tag = 'input window, operand 1']
    #allocation6 [shape = 's32[2]{0}', space=sflag, size = 0x8, scoped, tag = 'scoped memory for tpu_custom_call.1']
    #allocation7 [shape = 'u8[8192]{0}', space=vmem, size = 0x2000, scoped, tag = 'input window, operand 2, single buffered']
    #allocation8 [shape = 'u8[8192]{0}', space=vmem, size = 0x2000, scoped, tag = 'input window, operand 4, single buffered']
    #allocation9 [shape = 's32[1]{0}', space=sflag, size = 0x4, scoped, tag = 'scoped memory for tpu_custom_call.1']
    #allocation10 [shape = 'u8[8192]{0}', space=vmem, size = 0x2000, scoped, tag = 'output window, operand 0']
    #allocation11 [shape = 'u8[8192]{0}', space=vmem, size = 0x2000, scoped, tag = 'output window, operand 1']
    #allocation12 [shape = 's32[2]{0}', space=sflag, size = 0x8, scoped, tag = 'scoped memory for tpu_custom_call.1']
    %13 = vsyncpa [#allocation3], 0
    %s14 = scalar_lea.sflag [#allocation3], 1
    %15 = vsyncpa %s14, 0
    %16 = vsyncpa [#allocation6], 0
    %s17 = scalar_lea.sflag [#allocation6], 1
    %18 = vsyncpa %s17, 0
    %19 = vsyncpa [#allocation9], 0
    %20 = vsyncpa [#allocation4], 0
    %s21 = scalar_lea.sflag [#allocation4], 1
    %22 = vsyncpa %s21, 0
    %23 = vsyncpa [#allocation12], 0
    %s24 = scalar_lea.sflag [#allocation12], 1
    %25 = vsyncpa %s24, 0
    loop: start=0, step=1, limit=4
    $region2: #{tpu_custom_call.1} parent=1 // loop_pre_header
      _
    $region3: #{tpu_custom_call.1} parent=1 // loop_header
      %s27 = sphi 0, %s31
      %p28 = scmp.ge.s32.totalorder %s27, 4
      %s34 = sphi 0, %s46
      %s35 = sphi 0, %s42
      %s36 = sphi 0, %s34
      %s37 = sphi 0, %s35
      %s38 = sphi 0, %s36
      %s39 = sphi 0, %s37
      %s51 = sphi 0, %s53
      %s54 = sphi 0, %s51
      %s55 = sphi 0, %s54
      %s71 = sphi 0, %s55
      %s79 = sphi 0, %s81
      %s82 = sphi 0, %s79
      %s83 = sphi 0, %s82
      %s99 = sphi 0, %s83
      %s103 = sphi 0, %s103
      %s105 = sphi 0, %s103
      %s106 = sphi 0, %s105
      %s120 = sphi 0, %s106
      %s124 = sphi 0, %s124
      %s126 = sphi 0, %s124
      %s127 = sphi 0, %s126
      %s141 = sphi 0, %s127
      %s145 = sphi 0, %s145
      %s147 = sphi 0, %s145
      %s148 = sphi 0, %s147
      %s162 = sphi 0, %s148
      %s166 = sphi 0, %s166
      %s168 = sphi 0, %s166
      %s169 = sphi 0, %s168
      %s183 = sphi 0, %s169
      %s191 = sphi 0, %s193
      %s194 = sphi 0, %s191
      %s195 = sphi 0, %s194
      %s211 = sphi 0, %s195
      %s219 = sphi 0, %s221
      %s222 = sphi 0, %s219
      %s223 = sphi 0, %s222
      %s239 = sphi 0, %s223
    $region4: #{tpu_custom_call.1} parent=1 // loop_header_branch
      %30 = sbr.rel (%p28) target = $region8
    $region5: #{tpu_custom_call.1} parent=1 // loop_body
      %s32 = ssub.s32 %s27, 1
      %s33 = ssub.s32 %s27, 2
      %s40 = sadd.s32 1, %s35
      %p41 = scmp.ge.s32.totalorder %s40, 1
      %s42 = scalar_select %p41, 0, %s40
      %s43 = sadd.s32 1, %s34
      %s44 = scalar_select %p41, %s43, %s34
      %p45 = scmp.ge.s32.totalorder %s44, 2
      %s46 = scalar_select %p45, 0, %s44
      %s47 = ssub.s32 %s34, %s46
      %s48 = ssub.s32 %s35, %s42
      %s49 = sor.u32 %s47, %s48
      %p50 = scmp.eq.s32.totalorder %s49, 0
      %s52 = sadd.s32 %s51, 1
      %s53 = scalar_select %p50, %s51, %s52
      %p56 = pneg %p50
      %p57 = scmp.eq.s32.totalorder %s27, 1
      %p58 = por %p56, %p57
      %p59 = scmp.ne.s32.totalorder %s51, %s54
      %p60 = scmp.eq.s32.totalorder %s27, 0
      %p61 = por %p59, %p60
      %p62 = scmp.ne.s32.totalorder %s51, %s54
      %p63 = scmp.eq.s32.totalorder %s32, 1
      %p64 = por %p62, %p63
      %p65 = scmp.ne.s32.totalorder %s54, %s55
      %p66 = scmp.eq.s32.totalorder %s32, 0
      %p67 = por %p65, %p66
      %p68 = scmp.ne.s32.totalorder %s54, %s55
      %p69 = scmp.eq.s32.totalorder %s33, 1
      %p70 = por %p68, %p69
      %p72 = scmp.ne.s32.totalorder %s55, %s71
      %p73 = scmp.eq.s32.totalorder %s33, 0
      %p74 = por %p72, %p73
      %s75 = ssub.s32 %s34, %s46
      %s76 = ssub.s32 %s35, %s42
      %s77 = sor.u32 %s75, %s76
      %p78 = scmp.eq.s32.totalorder %s77, 0
      %s80 = sadd.s32 %s79, 1
      %s81 = scalar_select %p78, %s79, %s80
      %p84 = pneg %p78
      %p85 = scmp.eq.s32.totalorder %s27, 1
      %p86 = por %p84, %p85
      %p87 = scmp.ne.s32.totalorder %s79, %s82
      %p88 = scmp.eq.s32.totalorder %s27, 0
      %p89 = por %p87, %p88
      %p90 = scmp.ne.s32.totalorder %s79, %s82
      %p91 = scmp.eq.s32.totalorder %s32, 1
      %p92 = por %p90, %p91
      %p93 = scmp.ne.s32.totalorder %s82, %s83
      %p94 = scmp.eq.s32.totalorder %s32, 0
      %p95 = por %p93, %p94
      %p96 = scmp.ne.s32.totalorder %s82, %s83
      %p97 = scmp.eq.s32.totalorder %s33, 1
      %p98 = por %p96, %p97
      %p100 = scmp.ne.s32.totalorder %s83, %s99
      %p101 = scmp.eq.s32.totalorder %s33, 0
      %p102 = por %p100, %p101
      %s104 = sadd.s32 %s103, 1
      %p107 = scmp.eq.s32.totalorder %s27, 1
      %p108 = scmp.ne.s32.totalorder %s103, %s105
      %p109 = scmp.eq.s32.totalorder %s27, 0
      %p110 = por %p108, %p109
      %p111 = scmp.ne.s32.totalorder %s103, %s105
      %p112 = scmp.eq.s32.totalorder %s32, 1
      %p113 = por %p111, %p112
      %p114 = scmp.ne.s32.totalorder %s105, %s106
      %p115 = scmp.eq.s32.totalorder %s32, 0
      %p116 = por %p114, %p115
      %p117 = scmp.ne.s32.totalorder %s105, %s106
      %p118 = scmp.eq.s32.totalorder %s33, 1
      %p119 = por %p117, %p118
      %p121 = scmp.ne.s32.totalorder %s106, %s120
      %p122 = scmp.eq.s32.totalorder %s33, 0
      %p123 = por %p121, %p122
      %s125 = sadd.s32 %s124, 1
      %p128 = scmp.eq.s32.totalorder %s27, 1
      %p129 = scmp.ne.s32.totalorder %s124, %s126
      %p130 = scmp.eq.s32.totalorder %s27, 0
      %p131 = por %p129, %p130
      %p132 = scmp.ne.s32.totalorder %s124, %s126
      %p133 = scmp.eq.s32.totalorder %s32, 1
      %p134 = por %p132, %p133
      %p135 = scmp.ne.s32.totalorder %s126, %s127
      %p136 = scmp.eq.s32.totalorder %s32, 0
      %p137 = por %p135, %p136
      %p138 = scmp.ne.s32.totalorder %s126, %s127
      %p139 = scmp.eq.s32.totalorder %s33, 1
      %p140 = por %p138, %p139
      %p142 = scmp.ne.s32.totalorder %s127, %s141
      %p143 = scmp.eq.s32.totalorder %s33, 0
      %p144 = por %p142, %p143
      %s146 = sadd.s32 %s145, 1
      %p149 = scmp.eq.s32.totalorder %s27, 1
      %p150 = scmp.ne.s32.totalorder %s145, %s147
      %p151 = scmp.eq.s32.totalorder %s27, 0
      %p152 = por %p150, %p151
      %p153 = scmp.ne.s32.totalorder %s145, %s147
      %p154 = scmp.eq.s32.totalorder %s32, 1
      %p155 = por %p153, %p154
      %p156 = scmp.ne.s32.totalorder %s147, %s148
      %p157 = scmp.eq.s32.totalorder %s32, 0
      %p158 = por %p156, %p157
      %p159 = scmp.ne.s32.totalorder %s147, %s148
      %p160 = scmp.eq.s32.totalorder %s33, 1
      %p161 = por %p159, %p160
      %p163 = scmp.ne.s32.totalorder %s148, %s162
      %p164 = scmp.eq.s32.totalorder %s33, 0
      %p165 = por %p163, %p164
      %s167 = sadd.s32 %s166, 1
      %p170 = scmp.eq.s32.totalorder %s27, 1
      %p171 = scmp.ne.s32.totalorder %s166, %s168
      %p172 = scmp.eq.s32.totalorder %s27, 0
      %p173 = por %p171, %p172
      %p174 = scmp.ne.s32.totalorder %s166, %s168
      %p175 = scmp.eq.s32.totalorder %s32, 1
      %p176 = por %p174, %p175
      %p177 = scmp.ne.s32.totalorder %s168, %s169
      %p178 = scmp.eq.s32.totalorder %s32, 0
      %p179 = por %p177, %p178
      %p180 = scmp.ne.s32.totalorder %s168, %s169
      %p181 = scmp.eq.s32.totalorder %s33, 1
      %p182 = por %p180, %p181
      %p184 = scmp.ne.s32.totalorder %s169, %s183
      %p185 = scmp.eq.s32.totalorder %s33, 0
      %p186 = por %p184, %p185
      %s187 = ssub.s32 %s34, %s46
      %s188 = ssub.s32 %s35, %s42
      %s189 = sor.u32 %s187, %s188
      %p190 = scmp.eq.s32.totalorder %s189, 0
      %s192 = sadd.s32 %s191, 1
      %s193 = scalar_select %p190, %s191, %s192
      %p196 = pneg %p190
      %p197 = scmp.eq.s32.totalorder %s27, 1
      %p198 = por %p196, %p197
      %p199 = scmp.ne.s32.totalorder %s191, %s194
      %p200 = scmp.eq.s32.totalorder %s27, 0
      %p201 = por %p199, %p200
      %p202 = scmp.ne.s32.totalorder %s191, %s194
      %p203 = scmp.eq.s32.totalorder %s32, 1
      %p204 = por %p202, %p203
      %p205 = scmp.ne.s32.totalorder %s194, %s195
      %p206 = scmp.eq.s32.totalorder %s32, 0
      %p207 = por %p205, %p206
      %p208 = scmp.ne.s32.totalorder %s194, %s195
      %p209 = scmp.eq.s32.totalorder %s33, 1
      %p210 = por %p208, %p209
      %p212 = scmp.ne.s32.totalorder %s195, %s211
      %p213 = scmp.eq.s32.totalorder %s33, 0
      %p214 = por %p212, %p213
      %s215 = ssub.s32 %s34, %s46
      %s216 = ssub.s32 %s35, %s42
      %s217 = sor.u32 %s215, %s216
      %p218 = scmp.eq.s32.totalorder %s217, 0
      %s220 = sadd.s32 %s219, 1
      %s221 = scalar_select %p218, %s219, %s220
      %p224 = pneg %p218
      %p225 = scmp.eq.s32.totalorder %s27, 1
      %p226 = por %p224, %p225
      %p227 = scmp.ne.s32.totalorder %s219, %s222
      %p228 = scmp.eq.s32.totalorder %s27, 0
      %p229 = por %p227, %p228
      %p230 = scmp.ne.s32.totalorder %s219, %s222
      %p231 = scmp.eq.s32.totalorder %s32, 1
      %p232 = por %p230, %p231
      %p233 = scmp.ne.s32.totalorder %s222, %s223
      %p234 = scmp.eq.s32.totalorder %s32, 0
      %p235 = por %p233, %p234
      %p236 = scmp.ne.s32.totalorder %s222, %s223
      %p237 = scmp.eq.s32.totalorder %s33, 1
      %p238 = por %p236, %p237
      %p240 = scmp.ne.s32.totalorder %s223, %s239
      %p241 = scmp.eq.s32.totalorder %s33, 0
      %p242 = por %p240, %p241
      %p243 = scmp.le.s32.totalorder 1, %s27
      %p244 = scmp.lt.s32.totalorder %s27, 3
      %p245 = pnand %p243, %p244
      %p246 = pneg %p245
      // Predicated region
      $region9: #{tpu_custom_call.1} parent=5 // pred_check
        _
      $region10: #{tpu_custom_call.1} parent=5 // pred_check_branch
        %248 = sbr.rel (%p245) target = $region12
      $region11: #{tpu_custom_call.1} parent=5 // pred_region
        %s249 = ssub.s32 %s27, 1
        // Predicated region
        $region13: #{tpu_custom_call.1} parent=11 // pred_check
          %p250 = pneg %p116
        $region14: #{tpu_custom_call.1} parent=11 // pred_check_branch
          %252 = sbr.rel (%p250) target = $region16
        $region15: #{tpu_custom_call.1} parent=11 // pred_region
          %s254 = ssub.s32 256, 256
          %255 = vsyncadd [#allocation6], %s254
          %s256 = sshll.u32 [#allocation7], 4
          %s257 = int_to_ptr.vmem [resolvable:$true] %s256
          %262 = dma.hbm_to_vmem [thread:$0]  %s2, 256, %s257, [#allocation6], 64, 64, 4
        $region16: #{tpu_custom_call.1} parent=11 // pred_fallthru
          _
        // Predicated region
        $region17: #{tpu_custom_call.1} parent=11 // pred_check
          %p263 = pneg %p137
        $region18: #{tpu_custom_call.1} parent=11 // pred_check_branch
          %265 = sbr.rel (%p263) target = $region20
        $region19: #{tpu_custom_call.1} parent=11 // pred_region
          _
        $region20: #{tpu_custom_call.1} parent=11 // pred_fallthru
          _
        // Predicated region
        $region21: #{tpu_custom_call.1} parent=11 // pred_check
          %p266 = pneg %p158
        $region22: #{tpu_custom_call.1} parent=11 // pred_check_branch
          %268 = sbr.rel (%p266) target = $region24
        $region23: #{tpu_custom_call.1} parent=11 // pred_region
          %s270 = ssub.s32 256, 256
          %271 = vsyncadd [#allocation9], %s270
          %s272 = sshll.u32 [#allocation8], 4
          %s273 = int_to_ptr.vmem [resolvable:$true] %s272
          %278 = dma.hbm_to_vmem [thread:$0]  %s4, 256, %s273, [#allocation9], 64, 64, 4
        $region24: #{tpu_custom_call.1} parent=11 // pred_fallthru
          _
        // Predicated region
        $region25: #{tpu_custom_call.1} parent=11 // pred_check
          %p279 = pneg %p179
        $region26: #{tpu_custom_call.1} parent=11 // pred_check_branch
          %281 = sbr.rel (%p279) target = $region28
        $region27: #{tpu_custom_call.1} parent=11 // pred_region
          _
        $region28: #{tpu_custom_call.1} parent=11 // pred_fallthru
          _
      $region12: #{tpu_custom_call.1} parent=5 // pred_fallthru
        _
      %p282 = scmp.lt.s32.totalorder %s27, 2
      // Predicated region
      $region29: #{tpu_custom_call.1} parent=5 // pred_check
        %p283 = pneg %p282
      $region30: #{tpu_custom_call.1} parent=5 // pred_check_branch
        %285 = sbr.rel (%p283) target = $region32
      $region31: #{tpu_custom_call.1} parent=5 // pred_region
        // Predicated region
        $region33: #{tpu_custom_call.1} parent=31 // pred_check
          %p286 = pneg %p61
        $region34: #{tpu_custom_call.1} parent=31 // pred_check_branch
          %288 = sbr.rel (%p286) target = $region36
        $region35: #{tpu_custom_call.1} parent=31 // pred_region
          %s289 = sand.u32 %s51, 1
          %s290 = scalar_lea.sflag [#allocation3], %s289
          %s291 = sand.u32 %s51, 1
          %s292 = smul.addr %s291, 16
          %s293 = scalar_lea.vmem [#allocation2], %s292
          %s294 = smul.u32 2, %s35
          %s296 = ssub.s32 256, 256
          %297 = vsyncadd %s290, %s296
          %s298 = smul.addr %s34, 2
          %s299 = sadd.s32 %s294, %s298
          %s300 = smul.addr %s299, 128
          %s301 = scalar_lea.hbm %s0, %s300
          %s302 = sshll.u32 %s293, 4
          %s303 = int_to_ptr.vmem [resolvable:$true] %s302
          %308 = dma.hbm_to_vmem [thread:$0]  %s301, 256, %s303, %s290, 128, 128, 8
        $region36: #{tpu_custom_call.1} parent=31 // pred_fallthru
          _
        // Predicated region
        $region37: #{tpu_custom_call.1} parent=31 // pred_check
          %p309 = pneg %p89
        $region38: #{tpu_custom_call.1} parent=31 // pred_check_branch
          %311 = sbr.rel (%p309) target = $region40
        $region39: #{tpu_custom_call.1} parent=31 // pred_region
          %s312 = sand.u32 %s27, 1
          %s313 = scalar_lea.sflag [#allocation6], %s312
          %s314 = sand.u32 %s79, 1
          %s315 = smul.addr %s314, 16
          %s316 = scalar_lea.vmem [#allocation5], %s315
          %s317 = smul.u32 2, %s35
          %s319 = ssub.s32 256, 256
          %320 = vsyncadd %s313, %s319
          %s321 = smul.addr %s34, 2
          %s322 = sadd.s32 %s317, %s321
          %s323 = smul.addr %s322, 128
          %s324 = scalar_lea.hbm %s1, %s323
          %s325 = sshll.u32 %s316, 4
          %s326 = int_to_ptr.vmem [resolvable:$true] %s325
          %331 = dma.hbm_to_vmem [thread:$0]  %s324, 256, %s326, %s313, 128, 128, 8
        $region40: #{tpu_custom_call.1} parent=31 // pred_fallthru
          _
      $region32: #{tpu_custom_call.1} parent=5 // pred_fallthru
        _
      %p332 = scmp.le.s32.totalorder 1, %s27
      %p333 = scmp.lt.s32.totalorder %s27, 3
      %p334 = pnand %p332, %p333
      %p335 = pneg %p334
      // Predicated region
      $region41: #{tpu_custom_call.1} parent=5 // pred_check
        _
      $region42: #{tpu_custom_call.1} parent=5 // pred_check_branch
        %337 = sbr.rel (%p334) target = $region44
      $region43: #{tpu_custom_call.1} parent=5 // pred_region
        %s338 = ssub.s32 %s27, 1
        %s339 = sand.u32 %s54, 1
        %s340 = scalar_lea.sflag [#allocation3], %s339
        %s341 = sand.u32 %s54, 1
        %s342 = smul.addr %s341, 16
        %s343 = scalar_lea.vmem [#allocation2], %s342
        // Predicated region
        $region45: #{tpu_custom_call.1} parent=43 // pred_check
          %p344 = pneg %p67
        $region46: #{tpu_custom_call.1} parent=43 // pred_check_branch
          %346 = sbr.rel (%p344) target = $region48
        $region47: #{tpu_custom_call.1} parent=43 // pred_region
          %347 = dma.done %s340, 256
        $region48: #{tpu_custom_call.1} parent=43 // pred_fallthru
          _
        %s348 = sand.u32 %s32, 1
        %s349 = scalar_lea.sflag [#allocation6], %s348
        %s350 = sand.u32 %s82, 1
        %s351 = smul.addr %s350, 16
        %s352 = scalar_lea.vmem [#allocation5], %s351
        // Predicated region
        $region49: #{tpu_custom_call.1} parent=43 // pred_check
          %p353 = pneg %p95
        $region50: #{tpu_custom_call.1} parent=43 // pred_check_branch
          %355 = sbr.rel (%p353) target = $region52
        $region51: #{tpu_custom_call.1} parent=43 // pred_region
          %356 = dma.done %s349, 256
        $region52: #{tpu_custom_call.1} parent=43 // pred_fallthru
          _
        // Predicated region
        $region53: #{tpu_custom_call.1} parent=43 // pred_check
          %p357 = pneg %p116
        $region54: #{tpu_custom_call.1} parent=43 // pred_check_branch
          %359 = sbr.rel (%p357) target = $region56
        $region55: #{tpu_custom_call.1} parent=43 // pred_region
          %360 = dma.done [#allocation6], 256
        $region56: #{tpu_custom_call.1} parent=43 // pred_fallthru
          _
        // Predicated region
        $region57: #{tpu_custom_call.1} parent=43 // pred_check
          %p361 = pneg %p158
        $region58: #{tpu_custom_call.1} parent=43 // pred_check_branch
          %363 = sbr.rel (%p361) target = $region60
        $region59: #{tpu_custom_call.1} parent=43 // pred_region
          %364 = dma.done [#allocation9], 256
        $region60: #{tpu_custom_call.1} parent=43 // pred_fallthru
          _
        %s365 = sand.u32 %s54, 1
        %s366 = scalar_lea.sflag [#allocation3], %s365
        %s367 = sand.u32 %s54, 1
        %s368 = smul.addr %s367, 16
        %s369 = scalar_lea.vmem [#allocation2], %s368
        %p370 = pneg %p67
        %p371 = pneg %p64
        %s372 = sand.u32 %s32, 1
        %s373 = scalar_lea.sflag [#allocation6], %s372
        %s374 = sand.u32 %s82, 1
        %s375 = smul.addr %s374, 16
        %s376 = scalar_lea.vmem [#allocation5], %s375
        %p377 = pneg %p95
        %p378 = pneg %p92
        %p379 = pneg %p116
        %p380 = pneg %p113
        %p381 = pneg %p137
        %p382 = pneg %p134
        %p383 = pneg %p158
        %p384 = pneg %p155
        %p385 = pneg %p179
        %p386 = pneg %p176
        %p387 = pneg %p207
        %p388 = pneg %p204
        %s389 = sand.u32 %s194, 1
        %s390 = scalar_lea.sflag [#allocation4], %s389
        %s391 = sand.u32 %s194, 1
        %s392 = smul.addr %s391, 8
        %s393 = scalar_lea.vmem [#allocation10], %s392
        %p394 = pneg %p235
        %p395 = pneg %p232
        %s396 = sand.u32 %s222, 1
        %s397 = scalar_lea.sflag [#allocation12], %s396
        %s398 = sand.u32 %s222, 1
        %s399 = smul.addr %s398, 8
        %s400 = scalar_lea.vmem [#allocation11], %s399
        %s401 = smul.u32 2, %s37
        %s402 = smul.u32 2, %s37
        %s403 = smul.u32 2, %s37
        %s404 = smul.u32 2, %s37
        %v406 = vld [vmem:[%s343] sm:$0xff]
        %v407 = vld [vmem:[%s343 + $0x8] sm:$0xff]
        %v408 = vpack.c.bf16 %v407, %v406
        %v409 = vld [vmem:[%s352] sm:$0xff]
        %v410 = vld [vmem:[%s352 + $0x8] sm:$0xff]
        %v411 = vpack.c.bf16 %v410, %v409
        %v412 = vld [vmem:[#allocation7] sm:$0xf]
        %v413 = vld [vmem:[#allocation7 + $0x4] sm:$0xf]
        %v414 = vld [vmem:[#allocation7 + $0x8] sm:$0xf]
        %v415 = vld [vmem:[#allocation7 + $0xc] sm:$0xf]
        %v416 = vld [vmem:[%s3] sm:$0x1]
        %v418 = vlaneseq
        %v419 = vshrl.u32 %v418, 7
        %v420 = vsub.s32 0, %v419
        %v421 = vrot.slane %v416, %v420
        %v427 = vunpack.c.l.b16 %v412
        %v428 = vunpack.c.l.b16 %v413
        %v429 = vunpack.c.l.b16 %v414
        %v430 = vunpack.c.l.b16 %v415
        %v431 = vpack.c.b16 %v428, %v427
        %v432 = vpack.c.b16 %v430, %v429
        %vm435 = vcmask 261120
        %v437 = vsel %vm435, %v408, 0
        %439 = vmatprep.subr.bf16.mxu0 0
        %440 = vmatpush1.bf16.msra.mxu0 %v431
        %441 = vmatprep.subr.bf16.mxu0 0
        %442 = vmatpush1.bf16.msra.mxu0 %v432
        %443 = vmatprep.subr.bf16.mxu0 0
        %444 = vmatpush1.bf16.msra.mxu0 0
        %445 = vmatprep.subr.bf16.mxu0 0
        %446 = vmatpush1.bf16.msra.mxu0 0
        %447 = vmatprep.subr.bf16.mxu0 0
        %448 = vmatpush1.bf16.msra.mxu0 0
        %449 = vmatprep.subr.bf16.mxu0 0
        %450 = vmatpush1.bf16.msra.mxu0 0
        %451 = vmatprep.subr.bf16.mxu0 0
        %452 = vmatpush1.bf16.msra.mxu0 0
        %453 = vmatprep.subr.bf16.mxu0 0
        %454 = vmatpush1.bf16.msra.mxu0 0
        %455 = vmatprep.subr.bf16.mxu0 0
        %456 = vmatpush1.bf16.msra.mxu0 0
        %457 = vmatprep.subr.bf16.mxu0 0
        %458 = vmatpush1.bf16.msra.mxu0 0
        %459 = vmatprep.subr.bf16.mxu0 0
        %460 = vmatpush1.bf16.msra.mxu0 0
        %461 = vmatprep.subr.bf16.mxu0 0
        %462 = vmatpush1.bf16.msra.mxu0 0
        %463 = vmatprep.subr.bf16.mxu0 0
        %464 = vmatpush1.bf16.msra.mxu0 0
        %465 = vmatprep.subr.bf16.mxu0 0
        %466 = vmatpush1.bf16.msra.mxu0 0
        %467 = vmatprep.subr.bf16.mxu0 0
        %468 = vmatpush1.bf16.msra.mxu0 0
        %469 = vmatprep.subr.bf16.mxu0 0
        %470 = vmatpush1.bf16.msra.mxu0 0
        %471 = vmatprep.mubr.bf16.mxu0 0
        %472 = vmatmul.mubr.bf16.gmra.mrb[0].mxu0 %v437
        %v473 = vpop.f32.mrb[0].mxu0
        %v474 = vadd.f32 %v421, %v473
        %v475 = vpop.f32.mrb[0].mxu0
        %v476 = vpop.f32.mrb[0].mxu0
        %v477 = vadd.f32 %v421, %v476
        %v478 = vpop.f32.mrb[0].mxu0
        %479 = vdwg.mxu0
        %v480 = vld [vmem:[#allocation8] sm:$0xf]
        %v481 = vld [vmem:[#allocation8 + $0x4] sm:$0xf]
        %v482 = vld [vmem:[#allocation8 + $0x8] sm:$0xf]
        %v483 = vld [vmem:[#allocation8 + $0xc] sm:$0xf]
        %v484 = vld [vmem:[%s5] sm:$0x1]
        %v486 = vlaneseq
        %v487 = vshrl.u32 %v486, 7
        %v488 = vsub.s32 0, %v487
        %v489 = vrot.slane %v484, %v488
        %v495 = vunpack.c.l.b16 %v480
        %v496 = vunpack.c.l.b16 %v481
        %v497 = vunpack.c.l.b16 %v482
        %v498 = vunpack.c.l.b16 %v483
        %v499 = vpack.c.b16 %v496, %v495
        %v500 = vpack.c.b16 %v498, %v497
        %v504 = vsel %vm435, %v411, 0
        %506 = vmatprep.subr.bf16.mxu0 0
        %507 = vmatpush1.bf16.msra.mxu0 %v499
        %508 = vmatprep.subr.bf16.mxu0 0
        %509 = vmatpush1.bf16.msra.mxu0 %v500
        %510 = vmatprep.subr.bf16.mxu0 0
        %511 = vmatpush1.bf16.msra.mxu0 0
        %512 = vmatprep.subr.bf16.mxu0 0
        %513 = vmatpush1.bf16.msra.mxu0 0
        %514 = vmatprep.subr.bf16.mxu0 0
        %515 = vmatpush1.bf16.msra.mxu0 0
        %516 = vmatprep.subr.bf16.mxu0 0
        %517 = vmatpush1.bf16.msra.mxu0 0
        %518 = vmatprep.subr.bf16.mxu0 0
        %519 = vmatpush1.bf16.msra.mxu0 0
        %520 = vmatprep.subr.bf16.mxu0 0
        %521 = vmatpush1.bf16.msra.mxu0 0
        %522 = vmatprep.subr.bf16.mxu0 0
        %523 = vmatpush1.bf16.msra.mxu0 0
        %524 = vmatprep.subr.bf16.mxu0 0
        %525 = vmatpush1.bf16.msra.mxu0 0
        %526 = vmatprep.subr.bf16.mxu0 0
        %527 = vmatpush1.bf16.msra.mxu0 0
        %528 = vmatprep.subr.bf16.mxu0 0
        %529 = vmatpush1.bf16.msra.mxu0 0
        %530 = vmatprep.subr.bf16.mxu0 0
        %531 = vmatpush1.bf16.msra.mxu0 0
        %532 = vmatprep.subr.bf16.mxu0 0
        %533 = vmatpush1.bf16.msra.mxu0 0
        %534 = vmatprep.subr.bf16.mxu0 0
        %535 = vmatpush1.bf16.msra.mxu0 0
        %536 = vmatprep.subr.bf16.mxu0 0
        %537 = vmatpush1.bf16.msra.mxu0 0
        %538 = vmatprep.mubr.bf16.mxu0 0
        %539 = vmatmul.mubr.bf16.gmra.mrb[0].mxu0 %v504
        %v540 = vpop.f32.mrb[0].mxu0
        %v541 = vadd.f32 %v489, %v540
        %v542 = vpop.f32.mrb[0].mxu0
        %v543 = vpop.f32.mrb[0].mxu0
        %v544 = vadd.f32 %v489, %v543
        %v545 = vpop.f32.mrb[0].mxu0
        %546 = vdwg.mxu0
        %v547 = vpack.c.bf16 %v477, %v474
        %v549 = vunpack.c.l.b16 %v547
        %v550 = vunpack.c.h.b16 %v547
        %v551 = vpack.c.b16 %v549, %v549
        %v552 = vpack.c.b16 %v550, %v550
        %vm555 = vcmask 257024
        %556 = vst.msk [vmem:[%s393] sm:$0xf] %vm555, %v551
        %557 = vst.msk [vmem:[%s393 + $0x4] sm:$0xf] %vm555, %v552
        %v558 = vpack.c.bf16 %v544, %v541
        %v560 = vunpack.c.l.b16 %v558
        %v561 = vunpack.c.h.b16 %v558
        %v562 = vpack.c.b16 %v560, %v560
        %v563 = vpack.c.b16 %v561, %v561
        %566 = vst.msk [vmem:[%s400] sm:$0xf] %vm555, %v562
        %567 = vst.msk [vmem:[%s400 + $0x4] sm:$0xf] %vm555, %v563
        %s568 = sand.u32 %s194, 1
        %s569 = scalar_lea.sflag [#allocation4], %s568
        %s570 = sand.u32 %s194, 1
        %s571 = smul.addr %s570, 8
        %s572 = scalar_lea.vmem [#allocation10], %s571
        %s573 = sand.u32 %s222, 1
        %s574 = scalar_lea.sflag [#allocation12], %s573
        %s575 = sand.u32 %s222, 1
        %s576 = smul.addr %s575, 8
        %s577 = scalar_lea.vmem [#allocation11], %s576
        // Predicated region
        $region61: #{tpu_custom_call.1} parent=43 // pred_check
          %p578 = pneg %p204
        $region62: #{tpu_custom_call.1} parent=43 // pred_check_branch
          %580 = sbr.rel (%p578) target = $region64
        $region63: #{tpu_custom_call.1} parent=43 // pred_region
          %s581 = smul.u32 2, %s37
          %s583 = ssub.s32 128, 128
          %584 = vsyncadd %s569, %s583
          %s585 = smul.addr %s36, 2
          %s586 = sadd.s32 %s581, %s585
          %s587 = smul.addr %s586, 64
          %s588 = scalar_lea.hbm %s6, %s587
          %s589 = sshll.u32 %s572, 4
          %s590 = int_to_ptr.vmem [resolvable:$true] %s589
          %595 = dma.vmem_to_hbm [thread:$0]  %s590, 128, %s588, %s569, 64, 64, 4
        $region64: #{tpu_custom_call.1} parent=43 // pred_fallthru
          _
        // Predicated region
        $region65: #{tpu_custom_call.1} parent=43 // pred_check
          %p596 = pneg %p232
        $region66: #{tpu_custom_call.1} parent=43 // pred_check_branch
          %598 = sbr.rel (%p596) target = $region68
        $region67: #{tpu_custom_call.1} parent=43 // pred_region
          %s599 = smul.u32 2, %s37
          %s601 = ssub.s32 128, 128
          %602 = vsyncadd %s574, %s601
          %s603 = smul.addr %s36, 2
          %s604 = sadd.s32 %s599, %s603
          %s605 = smul.addr %s604, 64
          %s606 = scalar_lea.hbm %s7, %s605
          %s607 = sshll.u32 %s577, 4
          %s608 = int_to_ptr.vmem [resolvable:$true] %s607
          %613 = dma.vmem_to_hbm [thread:$0]  %s608, 128, %s606, %s574, 64, 64, 4
        $region68: #{tpu_custom_call.1} parent=43 // pred_fallthru
          _
      $region44: #{tpu_custom_call.1} parent=5 // pred_fallthru
        _
      %p614 = scmp.le.s32.totalorder 2, %s27
      // Predicated region
      $region69: #{tpu_custom_call.1} parent=5 // pred_check
        %p615 = pneg %p614
      $region70: #{tpu_custom_call.1} parent=5 // pred_check_branch
        %617 = sbr.rel (%p615) target = $region72
      $region71: #{tpu_custom_call.1} parent=5 // pred_region
        %s618 = ssub.s32 %s27, 2
        // Predicated region
        $region73: #{tpu_custom_call.1} parent=71 // pred_check
          %p619 = pneg %p210
        $region74: #{tpu_custom_call.1} parent=71 // pred_check_branch
          %621 = sbr.rel (%p619) target = $region76
        $region75: #{tpu_custom_call.1} parent=71 // pred_region
          %s622 = sand.u32 %s195, 1
          %s623 = scalar_lea.sflag [#allocation4], %s622
          %s624 = sand.u32 %s195, 1
          %s625 = smul.addr %s624, 8
          %s626 = scalar_lea.vmem [#allocation10], %s625
          %627 = dma.done %s623, 128
        $region76: #{tpu_custom_call.1} parent=71 // pred_fallthru
          _
        // Predicated region
        $region77: #{tpu_custom_call.1} parent=71 // pred_check
          %p628 = pneg %p238
        $region78: #{tpu_custom_call.1} parent=71 // pred_check_branch
          %630 = sbr.rel (%p628) target = $region80
        $region79: #{tpu_custom_call.1} parent=71 // pred_region
          %s631 = sand.u32 %s223, 1
          %s632 = scalar_lea.sflag [#allocation12], %s631
          %s633 = sand.u32 %s223, 1
          %s634 = smul.addr %s633, 8
          %s635 = scalar_lea.vmem [#allocation11], %s634
          %636 = dma.done %s632, 128
        $region80: #{tpu_custom_call.1} parent=71 // pred_fallthru
          _
      $region72: #{tpu_custom_call.1} parent=5 // pred_fallthru
        _
    $region6: #{tpu_custom_call.1} parent=1 // loop_footer
      %s31 = sadd.s32 1, %s27
    $region7: #{tpu_custom_call.1} parent=1 // loop_footer_branch
      %26 = sbr.rel target = $region3
    $region8: #{tpu_custom_call.1} parent=1 // loop_exit
      _
    %637 = vsyncpa [#allocation3], 1
    %s638 = scalar_lea.sflag [#allocation3], 1
    %639 = vsyncpa %s638, 1
    %640 = vsyncpa [#allocation6], 1
    %s641 = scalar_lea.sflag [#allocation6], 1
    %642 = vsyncpa %s641, 1
    %643 = vsyncpa [#allocation9], 1
    %644 = vsyncpa [#allocation4], 1
    %s645 = scalar_lea.sflag [#allocation4], 1
    %646 = vsyncpa %s645, 1
    %647 = vsyncpa [#allocation12], 1
    %s648 = scalar_lea.sflag [#allocation12], 1
    %649 = vsyncpa %s648, 1

</llo_original>
